<compile_context>
chip_gen: v6e
topology: v6e:2x2x1
jax: 0.10.0
libtpu: 0.0.40
codegen_flags: <defaults>
</compile_context>

<pallas_src>
import jax
import jax.numpy as jnp
from jax import lax
from jax.experimental import pallas as pl
from jax.experimental.pallas import tpu as pltpu

EPS = 1e-6      # pooling_config.params.eps
P_INIT = 3.0    # pooling_config.params.p (learnable scalar, init to 3)

MAX_TS = 512    # sequence tile (sublane-aligned)
MAX_TH = 512    # hidden tile (lane-aligned)


def _pick_tile(dim, max_tile, align):
    """Largest `align`-multiple divisor of `dim` that is <= max_tile, else full dim."""
    if dim <= max_tile:
        return dim
    t = (max_tile // align) * align
    while t >= align:
        if dim % t == 0:
            return t
        t -= align
    return dim


def gem_text_kernel(len_ref, p_ref, x_ref, o_ref, acc_ref):
    # len_ref: SMEM (B,) int32  -- scalar-prefetched valid-token counts
    # p_ref  : SMEM (1,) f32    -- learnable GeM exponent
    # x_ref  : VMEM (1, TS, TH) -- tile of last_hidden_state
    # o_ref  : VMEM (1, 1, TH)  -- pooled output tile (written at last S step)
    # acc_ref: VMEM (1, 1, TH) f32 scratch accumulator (resident across S axis)
    b = pl.program_id(0)
    s = pl.program_id(2)
    ns = pl.num_programs(2)
    ts = x_ref.shape[1]

    length = len_ref[b]

    @pl.when(s == 0)
    def _():
        acc_ref[...] = jnp.zeros_like(acc_ref)

    # Skip S-tiles that contain only padding tokens (no pow / no accumulate).
    @pl.when(s * ts < length)
    def _():
        p = p_ref[0]
        x = x_ref[...].astype(jnp.float32)                 # (1, TS, TH), f32 compute
        xc = jnp.maximum(x, EPS)                           # clamp(min=eps)
        powed = xc ** p                                    # EUP exp/log path
        # Regenerate the prefix mask in-register: token index < valid length.
        seq_idx = lax.broadcasted_iota(jnp.int32, x.shape, 1) + s * ts
        powed = jnp.where(seq_idx < length, powed, 0.0)    # mask AFTER pow
        acc_ref[...] += jnp.sum(powed, axis=1, keepdims=True)   # (1, 1, TH)

    @pl.when(s == ns - 1)
    def _():
        p = p_ref[0]
        den = jnp.maximum(length.astype(jnp.float32), EPS)  # clip(min=eps)
        inv_den = 1.0 / den
        o_ref[...] = ((acc_ref[...] * inv_den) ** (1.0 / p)).astype(o_ref.dtype)


def gem_text(x, attention_mask, p):
    """x: (B, S, H), attention_mask: (B, S) int/float {0,1}, p: (1,) float32."""
    B, S, H = x.shape
    lengths = jnp.sum(attention_mask.astype(jnp.int32), axis=1)   # == den per batch

    TS = _pick_tile(S, MAX_TS, 8)
    TH = _pick_tile(H, MAX_TH, 128)
    grid = (B, H // TH, S // TS)

    out = pl.pallas_call(
        gem_text_kernel,
        out_shape=jax.ShapeDtypeStruct((B, 1, H), x.dtype),
        grid_spec=pltpu.PrefetchScalarGridSpec(
            num_scalar_prefetch=1,                               # lengths -> SMEM
            grid=grid,
            in_specs=[
                pl.BlockSpec(memory_space=pltpu.MemorySpace.SMEM),          # p scalar
                pl.BlockSpec((1, TS, TH), lambda b, h, s, lens: (b, s, h)), # x tile
            ],
            out_specs=pl.BlockSpec((1, 1, TH), lambda b, h, s, lens: (b, 0, h)),
            scratch_shapes=[pltpu.VMEM((1, 1, TH), jnp.float32)],
        ),
        compiler_params=pltpu.CompilerParams(
            dimension_semantics=("parallel", "parallel", "arbitrary"),
            vmem_limit_bytes=32 * 1024 * 1024,
        ),
    )(lengths, p, x)
    return out.reshape(B, H)


def _reference(x, attention_mask, p):
    """Pure-JAX transcription of the PyTorch forward."""
    m = attention_mask.astype(jnp.float32)[:, :, None]
    num = ((jnp.clip(x.astype(jnp.float32), EPS) * m) ** p[0]).sum(axis=1)
    den = jnp.clip(m.sum(axis=1), EPS)
    return (num / den) ** (1.0 / p[0])


if __name__ == "__main__":
    key = jax.random.PRNGKey(0)
    k1, k2 = jax.random.split(key)

    # learnable p parameter, initialized exactly as nn.Parameter(torch.ones(1) * p)
    p = jnp.ones((1,), dtype=jnp.float32) * P_INIT

    # --- small shape consistent with the module (batch=2, seq=8, hidden=32) ---
    B, S, H = 2, 8, 32
    x = jax.random.normal(k1, (B, S, H), dtype=jnp.float32)
    lengths = jnp.array([5, 8], dtype=jnp.int32)
    attention_mask = (jnp.arange(S)[None, :] < lengths[:, None]).astype(jnp.int32)

    out = gem_text(x, attention_mask, p)
    jax.block_until_ready(out)
    ref = _reference(x, attention_mask, p)
    assert out.shape == (B, H)
    assert jnp.allclose(out, ref, atol=1e-5, rtol=1e-5), "mismatch vs reference (small)"

    # --- larger shape exercising the H-parallel / S-arbitrary tiling path ---
    B2, S2, H2 = 2, 1024, 1024
    x2 = jax.random.normal(k2, (B2, S2, H2), dtype=jnp.float32)
    lengths2 = jnp.array([700, 1024], dtype=jnp.int32)
    attention_mask2 = (jnp.arange(S2)[None, :] < lengths2[:, None]).astype(jnp.int32)

    out2 = gem_text(x2, attention_mask2, p)
    jax.block_until_ready(out2)
    ref2 = _reference(x2, attention_mask2, p)
    assert out2.shape == (B2, H2)
    assert jnp.allclose(out2, ref2, atol=1e-4, rtol=5e-4), "mismatch vs reference (tiled)"

    print("KERNEL_OK")
</pallas_src>

<mosaic_0001>
module attributes {stable_mosaic.version = 11 : i64} {
  func.func @gem_text_kernel(%arg0: i32, %arg1: i32, %arg2: i32, %arg3: memref<2xi32, #tpu.memory_space<smem>>, %arg4: memref<1xf32, #tpu.memory_space<smem>>, %arg5: memref<1x8x32xf32, #tpu.memory_space<vmem>>, %arg6: memref<1x1x32xf32, #tpu.memory_space<vmem>>, %arg7: memref<1x1x32xf32, #tpu.memory_space<vmem>>) attributes {dimension_semantics = [#tpu.dimension_semantics<parallel>, #tpu.dimension_semantics<parallel>, #tpu.dimension_semantics<arbitrary>], iteration_bounds = array<i64: 2, 1, 1>, scalar_prefetch = 1 : i64, scratch_operands = 1 : i64, tpu.core_type = #tpu.core_type<tc>, window_params = [{transform_indices = @transform_0, window_bounds = array<i64: 1>}, {transform_indices = @transform_1, window_bounds = array<i64: 1, 8, 32>}, {transform_indices = @transform_2, window_bounds = array<i64: 1, 1, 32>}]} {
    %0 = arith.index_cast %arg0 : i32 to index
    %1 = memref.load %arg3[%0] : memref<2xi32, #tpu.memory_space<smem>>
    %c0_i32 = arith.constant 0 : i32
    %2 = arith.cmpi eq, %arg2, %c0_i32 : i32
    %3 = arith.extui %2 : i1 to i32
    %c0_i32_0 = arith.constant 0 : i32
    %4 = arith.cmpi ne, %3, %c0_i32_0 : i32
    scf.if %4 {
      %cst = arith.constant 0.000000e+00 : f32
      %12 = vector.broadcast %cst : f32 to vector<1x1x32xf32>
      %c0 = arith.constant 0 : index
      %c0_4 = arith.constant 0 : index
      %c0_5 = arith.constant 0 : index
      %13 = vector.load %arg7[%c0, %c0_4, %c0_5] : memref<1x1x32xf32, #tpu.memory_space<vmem>>, vector<1x1x32xf32>
      tpu.vector_store %arg7[%c0, %c0_4, %c0_5], %12 {strides = array<i32>} : memref<1x1x32xf32, #tpu.memory_space<vmem>>, vector<1x1x32xf32>,
    } else {
    }
    %c8_i32 = arith.constant 8 : i32
    %5 = arith.muli %arg2, %c8_i32 : i32
    %6 = arith.cmpi slt, %5, %1 : i32
    %7 = arith.extui %6 : i1 to i32
    %c0_i32_1 = arith.constant 0 : i32
    %8 = arith.cmpi ne, %7, %c0_i32_1 : i32
    scf.if %8 {
      %c0 = arith.constant 0 : index
      %12 = memref.load %arg4[%c0] : memref<1xf32, #tpu.memory_space<smem>>
      %c0_4 = arith.constant 0 : index
      %c0_5 = arith.constant 0 : index
      %c0_6 = arith.constant 0 : index
      %13 = vector.load %arg5[%c0_4, %c0_5, %c0_6] : memref<1x8x32xf32, #tpu.memory_space<vmem>>, vector<1x8x32xf32>
      %cst = arith.constant 9.99999997E-7 : f32
      %14 = vector.broadcast %cst : f32 to vector<1x8x32xf32>
      %15 = arith.maximumf %13, %14 : vector<1x8x32xf32>
      %16 = vector.broadcast %12 : f32 to vector<1x8x32xf32>
      %17 = math.powf %15, %16 : vector<1x8x32xf32>
      %18 = tpu.iota {dimensions = array<i32: 1>} : vector<1x8x32xi32>
      %c8_i32_7 = arith.constant 8 : i32
      %19 = arith.muli %arg2, %c8_i32_7 : i32
      %20 = vector.broadcast %19 : i32 to vector<1x8x32xi32>
      %21 = arith.addi %18, %20 : vector<1x8x32xi32>
      %22 = vector.broadcast %1 : i32 to vector<1x8x32xi32>
      %23 = arith.cmpi slt, %21, %22 : vector<1x8x32xi32>
      %cst_8 = arith.constant 0.000000e+00 : f32
      %24 = vector.broadcast %cst_8 : f32 to vector<1x8x32xf32>
      %25 = arith.select %23, %17, %24 : vector<1x8x32xi1>, vector<1x8x32xf32>
      %c0_9 = arith.constant 0 : index
      %c0_10 = arith.constant 0 : index
      %c0_11 = arith.constant 0 : index
      %26 = vector.load %arg7[%c0_9, %c0_10, %c0_11] : memref<1x1x32xf32, #tpu.memory_space<vmem>>, vector<1x1x32xf32>
      %cst_12 = arith.constant dense<0.000000e+00> : vector<1x32xf32>
      %27 = vector.multi_reduction <add>, %25, %cst_12 [1] : vector<1x8x32xf32> to vector<1x32xf32>
      %28 = vector.shape_cast %27 : vector<1x32xf32> to vector<1x1x32xf32>
      %29 = arith.addf %26, %28 : vector<1x1x32xf32>
      %c0_13 = arith.constant 0 : index
      %c0_14 = arith.constant 0 : index
      %c0_15 = arith.constant 0 : index
      %30 = vector.load %arg7[%c0_13, %c0_14, %c0_15] : memref<1x1x32xf32, #tpu.memory_space<vmem>>, vector<1x1x32xf32>
      tpu.vector_store %arg7[%c0_13, %c0_14, %c0_15], %29 {strides = array<i32>} : memref<1x1x32xf32, #tpu.memory_space<vmem>>, vector<1x1x32xf32>,
    } else {
    }
    %c0_i32_2 = arith.constant 0 : i32
    %9 = arith.cmpi eq, %arg2, %c0_i32_2 : i32
    %10 = arith.extui %9 : i1 to i32
    %c0_i32_3 = arith.constant 0 : i32
    %11 = arith.cmpi ne, %10, %c0_i32_3 : i32
    scf.if %11 {
      %c0 = arith.constant 0 : index
      %12 = memref.load %arg4[%c0] : memref<1xf32, #tpu.memory_space<smem>>
      %13 = arith.sitofp %1 : i32 to f32
      %cst = arith.constant 9.99999997E-7 : f32
      %14 = arith.maximumf %13, %cst : f32
      %cst_4 = arith.constant 1.000000e+00 : f32
      %15 = arith.divf %cst_4, %14 : f32
      %c0_5 = arith.constant 0 : index
      %c0_6 = arith.constant 0 : index
      %c0_7 = arith.constant 0 : index
      %16 = vector.load %arg7[%c0_5, %c0_6, %c0_7] : memref<1x1x32xf32, #tpu.memory_space<vmem>>, vector<1x1x32xf32>
      %17 = vector.broadcast %15 : f32 to vector<1x1x32xf32>
      %18 = arith.mulf %16, %17 : vector<1x1x32xf32>
      %cst_8 = arith.constant 1.000000e+00 : f32
      %19 = arith.divf %cst_8, %12 : f32
      %20 = vector.broadcast %19 : f32 to vector<1x1x32xf32>
      %21 = math.powf %18, %20 : vector<1x1x32xf32>
      %c0_9 = arith.constant 0 : index
      %c0_10 = arith.constant 0 : index
      %c0_11 = arith.constant 0 : index
      %22 = vector.load %arg6[%c0_9, %c0_10, %c0_11] : memref<1x1x32xf32, #tpu.memory_space<vmem>>, vector<1x1x32xf32>
      tpu.vector_store %arg6[%c0_9, %c0_10, %c0_11], %21 {strides = array<i32>} : memref<1x1x32xf32, #tpu.memory_space<vmem>>, vector<1x1x32xf32>,
    } else {
    }
    return
  }
  func.func @transform_0(%arg0: i32, %arg1: i32, %arg2: i32, %arg3: memref<2xi32, #tpu.memory_space<smem>>) -> i32 {
    %c0_i32 = arith.constant 0 : i32
    %c0_i32_0 = arith.constant 0 : i32
    return %c0_i32 : i32
  }
  func.func @transform_1(%arg0: i32, %arg1: i32, %arg2: i32, %arg3: memref<2xi32, #tpu.memory_space<smem>>) -> (i32, i32, i32) {
    %c0_i32 = arith.constant 0 : i32
    return %arg0, %arg2, %arg1 : i32, i32, i32
  }
  func.func @transform_2(%arg0: i32, %arg1: i32, %arg2: i32, %arg3: memref<2xi32, #tpu.memory_space<smem>>) -> (i32, i32, i32) {
    %c0_i32 = arith.constant 0 : i32
    %c0_i32_0 = arith.constant 0 : i32
    return %arg0, %c0_i32, %arg1 : i32, i32, i32
  }
}

</mosaic_0001>

<llo_original>
// kernel: tpu_custom_call.1
$region0: #{tpu_custom_call.1}
  #allocation0 [shape = 'u32[]', space=smem, size = 0x4, offset = 0x4, fixed_abs, tag = 'smem constant byte address 0x4 - core index']
  #allocation1 [shape = 'u32[144,128]{1,0:T(1,128)}', space=vmem, size = 0x12000, scoped, tag = 'internal scratch']
  #allocation2 [shape = 'f32[1,1,32]{2,1,0:T(1,128)}', space=vmem, size = 0x200, scoped, tag = 'scratch operand']
  #allocation3 [shape = 's32[1]{0}', space=sflag, size = 0x4, scoped, tag = 'scoped memory for tpu_custom_call.1']
  #allocation4 [shape = 'u8[512]{0}', space=smem, size = 0x200, scoped, tag = 'prefetched SMEM operand 0']
  #allocation5 [shape = 'f32[1]{0:T(128)S(6)}', space=smem, size = 0x200, scoped, tag = 'scoped memory for tpu_custom_call.1']
  %s0 = inlined_call_operand.vmem [shape: s32[2], index: 0, kind: input, shape index: {}]
  %s1 = inlined_call_operand.<no memory space> [shape: f32[1], index: 1, kind: input, shape index: {}]
  %s2 = inlined_call_operand.hbm [shape: f32[2,8,32], index: 2, kind: input, shape index: {}]
  %s3 = inlined_call_operand.hbm [shape: f32[2,1,32], index: 3, kind: output, shape index: {}]
  %s4 = sld [smem:[#allocation0]]
  $region57: #{tpu_custom_call.1} parent=0
    _
  %s6 = ssub.s32 1, %s4
  %s7 = scalar_select 0, %s6, %s4
  %s8 = sshll.u32 %s0, 4
  %s9 = int_to_ptr.vmem [resolvable:$true] %s8
  %11 = dma.vmem_to_smem %s9, 16, [#allocation4], [#allocation3]
  %12 = sst [smem:[#allocation5]] %s1
  %13 = dma.done [#allocation3], 16
  %14 = sfence
  $region1: #{tpu_custom_call.1} parent=0
    #allocation6 [shape = 'u8[8192]{0}', space=vmem, size = 0x2000, scoped, tag = 'input window, operand 2']
    #allocation7 [shape = 's32[2]{0}', space=sflag, size = 0x8, scoped, tag = 'scoped memory for tpu_custom_call.1']
    #allocation8 [shape = 's32[2]{0}', space=sflag, size = 0x8, scoped, tag = 'scoped memory for tpu_custom_call.1']
    #allocation9 [shape = 'u8[1024]{0}', space=vmem, size = 0x400, scoped, tag = 'output window, operand 0']
    %15 = vsyncpa [#allocation7], 0
    %s16 = scalar_lea.sflag [#allocation7], 1
    %17 = vsyncpa %s16, 0
    %18 = vsyncpa [#allocation8], 0
    %s19 = scalar_lea.sflag [#allocation8], 1
    %20 = vsyncpa %s19, 0
    loop: start=0, step=1, limit=4
    $region2: #{tpu_custom_call.1} parent=1 // loop_pre_header
      _
    $region3: #{tpu_custom_call.1} parent=1 // loop_header
      %s22 = sphi 0, %s26
      %p23 = scmp.ge.s32.totalorder %s22, 4
      %s29 = sphi 0, %s48
      %s30 = sphi 0, %s44
      %s31 = sphi 0, %s40
      %s32 = sphi 0, %s29
      %s33 = sphi 0, %s30
      %s34 = sphi 0, %s31
      %s35 = sphi 0, %s32
      %s36 = sphi 0, %s33
      %s37 = sphi 0, %s34
      %s49 = sphi 0, %s49
      %s51 = sphi 0, %s49
      %s52 = sphi 0, %s51
      %s66 = sphi 0, %s52
      %s76 = sphi 0, %s78
      %s79 = sphi 0, %s76
      %s80 = sphi 0, %s79
      %s96 = sphi 0, %s80
      %s104 = sphi 0, %s106
      %s107 = sphi 0, %s104
      %s108 = sphi 0, %s107
      %s124 = sphi 0, %s108
    $region4: #{tpu_custom_call.1} parent=1 // loop_header_branch
      %25 = sbr.rel (%p23) target = $region8
    $region5: #{tpu_custom_call.1} parent=1 // loop_body
      %s27 = ssub.s32 %s22, 1
      %s28 = ssub.s32 %s22, 2
      %s38 = sadd.s32 1, %s31
      %p39 = scmp.ge.s32.totalorder %s38, 1
      %s40 = scalar_select %p39, 0, %s38
      %s41 = sadd.s32 1, %s30
      %s42 = scalar_select %p39, %s41, %s30
      %p43 = scmp.ge.s32.totalorder %s42, 1
      %s44 = scalar_select %p43, 0, %s42
      %s45 = sadd.s32 1, %s29
      %s46 = scalar_select %p43, %s45, %s29
      %p47 = scmp.ge.s32.totalorder %s46, 2
      %s48 = scalar_select %p47, 0, %s46
      %s50 = sadd.s32 %s49, 1
      %p53 = scmp.eq.s32.totalorder %s22, 1
      %p54 = scmp.ne.s32.totalorder %s49, %s51
      %p55 = scmp.eq.s32.totalorder %s22, 0
      %p56 = por %p54, %p55
      %p57 = scmp.ne.s32.totalorder %s49, %s51
      %p58 = scmp.eq.s32.totalorder %s27, 1
      %p59 = por %p57, %p58
      %p60 = scmp.ne.s32.totalorder %s51, %s52
      %p61 = scmp.eq.s32.totalorder %s27, 0
      %p62 = por %p60, %p61
      %p63 = scmp.ne.s32.totalorder %s51, %s52
      %p64 = scmp.eq.s32.totalorder %s28, 1
      %p65 = por %p63, %p64
      %p67 = scmp.ne.s32.totalorder %s52, %s66
      %p68 = scmp.eq.s32.totalorder %s28, 0
      %p69 = por %p67, %p68
      %s70 = ssub.s32 %s29, %s48
      %s71 = ssub.s32 %s31, %s40
      %s72 = sor.u32 %s70, %s71
      %s73 = ssub.s32 %s30, %s44
      %s74 = sor.u32 %s72, %s73
      %p75 = scmp.eq.s32.totalorder %s74, 0
      %s77 = sadd.s32 %s76, 1
      %s78 = scalar_select %p75, %s76, %s77
      %p81 = pneg %p75
      %p82 = scmp.eq.s32.totalorder %s22, 1
      %p83 = por %p81, %p82
      %p84 = scmp.ne.s32.totalorder %s76, %s79
      %p85 = scmp.eq.s32.totalorder %s22, 0
      %p86 = por %p84, %p85
      %p87 = scmp.ne.s32.totalorder %s76, %s79
      %p88 = scmp.eq.s32.totalorder %s27, 1
      %p89 = por %p87, %p88
      %p90 = scmp.ne.s32.totalorder %s79, %s80
      %p91 = scmp.eq.s32.totalorder %s27, 0
      %p92 = por %p90, %p91
      %p93 = scmp.ne.s32.totalorder %s79, %s80
      %p94 = scmp.eq.s32.totalorder %s28, 1
      %p95 = por %p93, %p94
      %p97 = scmp.ne.s32.totalorder %s80, %s96
      %p98 = scmp.eq.s32.totalorder %s28, 0
      %p99 = por %p97, %p98
      %s100 = ssub.s32 %s29, %s48
      %s101 = ssub.s32 %s30, %s44
      %s102 = sor.u32 %s100, %s101
      %p103 = scmp.eq.s32.totalorder %s102, 0
      %s105 = sadd.s32 %s104, 1
      %s106 = scalar_select %p103, %s104, %s105
      %p109 = pneg %p103
      %p110 = scmp.eq.s32.totalorder %s22, 1
      %p111 = por %p109, %p110
      %p112 = scmp.ne.s32.totalorder %s104, %s107
      %p113 = scmp.eq.s32.totalorder %s22, 0
      %p114 = por %p112, %p113
      %p115 = scmp.ne.s32.totalorder %s104, %s107
      %p116 = scmp.eq.s32.totalorder %s27, 1
      %p117 = por %p115, %p116
      %p118 = scmp.ne.s32.totalorder %s107, %s108
      %p119 = scmp.eq.s32.totalorder %s27, 0
      %p120 = por %p118, %p119
      %p121 = scmp.ne.s32.totalorder %s107, %s108
      %p122 = scmp.eq.s32.totalorder %s28, 1
      %p123 = por %p121, %p122
      %p125 = scmp.ne.s32.totalorder %s108, %s124
      %p126 = scmp.eq.s32.totalorder %s28, 0
      %p127 = por %p125, %p126
      %p128 = scmp.le.s32.totalorder 1, %s22
      %p129 = scmp.lt.s32.totalorder %s22, 3
      %p130 = pnand %p128, %p129
      %p131 = pneg %p130
      // Predicated region
      $region9: #{tpu_custom_call.1} parent=5 // pred_check
        _
      $region10: #{tpu_custom_call.1} parent=5 // pred_check_branch
        %133 = sbr.rel (%p130) target = $region12
      $region11: #{tpu_custom_call.1} parent=5 // pred_region
        %s134 = ssub.s32 %s22, 1
        // Predicated region
        $region13: #{tpu_custom_call.1} parent=11 // pred_check
          %p135 = pneg %p62
        $region14: #{tpu_custom_call.1} parent=11 // pred_check_branch
          %137 = sbr.rel (%p135) target = $region16
        $region15: #{tpu_custom_call.1} parent=11 // pred_region
          _
        $region16: #{tpu_custom_call.1} parent=11 // pred_fallthru
          _
      $region12: #{tpu_custom_call.1} parent=5 // pred_fallthru
        _
      %p138 = scmp.lt.s32.totalorder %s22, 2
      // Predicated region
      $region17: #{tpu_custom_call.1} parent=5 // pred_check
        %p139 = pneg %p138
      $region18: #{tpu_custom_call.1} parent=5 // pred_check_branch
        %141 = sbr.rel (%p139) target = $region20
      $region19: #{tpu_custom_call.1} parent=5 // pred_region
        // Predicated region
        $region21: #{tpu_custom_call.1} parent=19 // pred_check
          %p142 = pneg %p86
        $region22: #{tpu_custom_call.1} parent=19 // pred_check_branch
          %144 = sbr.rel (%p142) target = $region24
        $region23: #{tpu_custom_call.1} parent=19 // pred_region
          %s145 = sand.u32 %s76, 1
          %s146 = scalar_lea.sflag [#allocation7], %s145
          %s147 = sand.u32 %s76, 1
          %s148 = smul.addr %s147, 8
          %s149 = scalar_lea.vmem [#allocation6], %s148
          %s151 = ssub.s32 128, 128
          %152 = vsyncadd %s146, %s151
          %s153 = sadd.s32 %s30, %s31
          %s154 = sadd.s32 %s153, %s29
          %s155 = smul.addr %s154, 128
          %s156 = scalar_lea.hbm %s2, %s155
          %s158 = sshll.u32 %s149, 4
          %s159 = int_to_ptr.vmem [resolvable:$true] %s158
          %161 = dma.hbm_to_vmem [thread:$0]  %s156, 128, %s159, %s146
        $region24: #{tpu_custom_call.1} parent=19 // pred_fallthru
          _
      $region20: #{tpu_custom_call.1} parent=5 // pred_fallthru
        _
      %p162 = scmp.le.s32.totalorder 1, %s22
      %p163 = scmp.lt.s32.totalorder %s22, 3
      %p164 = pnand %p162, %p163
      %p165 = pneg %p164
      // Predicated region
      $region25: #{tpu_custom_call.1} parent=5 // pred_check
        _
      $region26: #{tpu_custom_call.1} parent=5 // pred_check_branch
        %167 = sbr.rel (%p164) target = $region28
      $region27: #{tpu_custom_call.1} parent=5 // pred_region
        %s168 = ssub.s32 %s22, 1
        %s169 = sand.u32 %s79, 1
        %s170 = scalar_lea.sflag [#allocation7], %s169
        %s171 = sand.u32 %s79, 1
        %s172 = smul.addr %s171, 8
        %s173 = scalar_lea.vmem [#allocation6], %s172
        // Predicated region
        $region29: #{tpu_custom_call.1} parent=27 // pred_check
          %p174 = pneg %p92
        $region30: #{tpu_custom_call.1} parent=27 // pred_check_branch
          %176 = sbr.rel (%p174) target = $region32
        $region31: #{tpu_custom_call.1} parent=27 // pred_region
          %177 = dma.done %s170, 128
        $region32: #{tpu_custom_call.1} parent=27 // pred_fallthru
          _
        %p178 = pneg %p62
        %p179 = pneg %p59
        %s180 = sand.u32 %s79, 1
        %s181 = scalar_lea.sflag [#allocation7], %s180
        %s182 = sand.u32 %s79, 1
        %s183 = smul.addr %s182, 8
        %s184 = scalar_lea.vmem [#allocation6], %s183
        %p185 = pneg %p92
        %p186 = pneg %p89
        %p187 = pneg %p120
        %p188 = pneg %p117
        %s189 = sand.u32 %s107, 1
        %s190 = scalar_lea.sflag [#allocation8], %s189
        %s191 = sand.u32 %s107, 1
        %s192 = scalar_lea.vmem [#allocation9], %s191
        %s193 = sld [smem:[#allocation4 + %s32]]
        %p194 = scmp.eq.s32.totalorder %s34, 0
        // Predicated region
        $region33: #{tpu_custom_call.1} parent=27 // pred_check
          %p195 = pneg %p194
        $region34: #{tpu_custom_call.1} parent=27 // pred_check_branch
          %197 = sbr.rel (%p195) target = $region36
        $region35: #{tpu_custom_call.1} parent=27 // pred_region
          %vm198 = vcmask 253952
          %199 = vst.msk [vmem:[#allocation2] sm:$0x1] %vm198, 0.0
        $region36: #{tpu_custom_call.1} parent=27 // pred_fallthru
          _
        %s200 = smul.u32 %s34, 8
        %p201 = scmp.lt.s32.totalorder %s200, %s193
        // Predicated region
        $region37: #{tpu_custom_call.1} parent=27 // pred_check
          %p202 = pneg %p201
        $region38: #{tpu_custom_call.1} parent=27 // pred_check_branch
          %204 = sbr.rel (%p202) target = $region40
        $region39: #{tpu_custom_call.1} parent=27 // pred_region
          %s205 = sld [smem:[#allocation5]]
          %v206 = vld [vmem:[%s173] sm:$0xff]
          %v207 = vmax.f32 %v206, 1e-06
          %v208 = vstv %s205
          %v209 = vpow.f32 %v207, %v208
          %v210 = vlaneseq
          %v211 = vshrl.u32 %v210, 7
          %v212 = vstv %s200
          %v213 = vadd.s32 %v211, %v212
          %v214 = vstv %s193
          %vm215 = vcmp.lt.s32.totalorder %v213, %v214
          %v216 = vsel %vm215, %v209, 0.0
          %v217 = vld [vmem:[#allocation2] sm:$0x1]
          %vm218 = vcmask 261120
          %v219 = vsel %vm218, %v216, 0.0
          %v220 = vrot.slane %v219, 4
          %v221 = vadd.f32 %v219, %v220
          %v222 = vrot.slane %v221, 2
          %v223 = vadd.f32 %v221, %v222
          %v224 = vrot.slane %v223, 1
          %v225 = vadd.f32 %v223, %v224
          %v226 = vadd.f32 %v217, %v225
          %vm227 = vcmask 253952
          %228 = vst.msk [vmem:[#allocation2] sm:$0x1] %vm227, %v226
        $region40: #{tpu_custom_call.1} parent=27 // pred_fallthru
          _
        // Predicated region
        $region41: #{tpu_custom_call.1} parent=27 // pred_check
          %p229 = pneg %p194
        $region42: #{tpu_custom_call.1} parent=27 // pred_check_branch
          %231 = sbr.rel (%p229) target = $region44
        $region43: #{tpu_custom_call.1} parent=27 // pred_region
          %s232 = sld [smem:[#allocation5]]
          %s233 = scvt.s32.f32 %s193
          %s234 = smax.f32 %s233, 1e-06
          %v235 = vstv %s234
          %v236 = vrcp.pop %v235
          %s237 = vtos %v236
          %v238 = vld [vmem:[#allocation2] sm:$0x1]
          %v239 = vstv %s237
          %v240 = vmul.f32 %v238, %v239
          %v241 = vstv %s232
          %v242 = vrcp.pop %v241
          %s243 = vtos %v242
          %v244 = vstv %s243
          %v245 = vpow.f32 %v240, %v244
          %vm246 = vcmask 253952
          %247 = vst.msk [vmem:[%s192] sm:$0x1] %vm246, %v245
        $region44: #{tpu_custom_call.1} parent=27 // pred_fallthru
          _
        %s248 = sand.u32 %s107, 1
        %s249 = scalar_lea.sflag [#allocation8], %s248
        %s250 = sand.u32 %s107, 1
        %s251 = scalar_lea.vmem [#allocation9], %s250
        // Predicated region
        $region45: #{tpu_custom_call.1} parent=27 // pred_check
          %p252 = pneg %p117
        $region46: #{tpu_custom_call.1} parent=27 // pred_check_branch
          %254 = sbr.rel (%p252) target = $region48
        $region47: #{tpu_custom_call.1} parent=27 // pred_region
          %s256 = ssub.s32 16, 16
          %257 = vsyncadd %s249, %s256
          %s258 = sadd.s32 %s33, %s32
          %s259 = smul.addr %s258, 16
          %s260 = scalar_lea.hbm %s3, %s259
          %s262 = sshll.u32 %s251, 4
          %s263 = int_to_ptr.vmem [resolvable:$true] %s262
          %265 = dma.vmem_to_hbm [thread:$0]  %s263, 16, %s260, %s249
        $region48: #{tpu_custom_call.1} parent=27 // pred_fallthru
          _
      $region28: #{tpu_custom_call.1} parent=5 // pred_fallthru
        _
      %p266 = scmp.le.s32.totalorder 2, %s22
      // Predicated region
      $region49: #{tpu_custom_call.1} parent=5 // pred_check
        %p267 = pneg %p266
      $region50: #{tpu_custom_call.1} parent=5 // pred_check_branch
        %269 = sbr.rel (%p267) target = $region52
      $region51: #{tpu_custom_call.1} parent=5 // pred_region
        %s270 = ssub.s32 %s22, 2
        // Predicated region
        $region53: #{tpu_custom_call.1} parent=51 // pred_check
          %p271 = pneg %p123
        $region54: #{tpu_custom_call.1} parent=51 // pred_check_branch
          %273 = sbr.rel (%p271) target = $region56
        $region55: #{tpu_custom_call.1} parent=51 // pred_region
          %s274 = sand.u32 %s108, 1
          %s275 = scalar_lea.sflag [#allocation8], %s274
          %s276 = sand.u32 %s108, 1
          %s277 = scalar_lea.vmem [#allocation9], %s276
          %278 = dma.done %s275, 16
        $region56: #{tpu_custom_call.1} parent=51 // pred_fallthru
          _
      $region52: #{tpu_custom_call.1} parent=5 // pred_fallthru
        _
    $region6: #{tpu_custom_call.1} parent=1 // loop_footer
      %s26 = sadd.s32 1, %s22
    $region7: #{tpu_custom_call.1} parent=1 // loop_footer_branch
      %21 = sbr.rel target = $region3
    $region8: #{tpu_custom_call.1} parent=1 // loop_exit
      _
    %279 = vsyncpa [#allocation7], 1
    %s280 = scalar_lea.sflag [#allocation7], 1
    %281 = vsyncpa %s280, 1
    %282 = vsyncpa [#allocation8], 1
    %s283 = scalar_lea.sflag [#allocation8], 1
    %284 = vsyncpa %s283, 1

</llo_original>
